<compile_context>
chip_gen: v5e
topology: v5e:2x2
jax: 0.10.0
libtpu: 0.0.40
codegen_flags: <defaults>
</compile_context>

<pallas_src>
import functools
import math

import jax
import jax.numpy as jnp
from jax.experimental import pallas as pl
from jax.experimental.pallas import tpu as pltpu

_PART_LANES = 128   # lane width of the per-tile loss-partials output
_NEG = -1e30        # finite "-inf" for masking padded class lanes


def _round_up(x, m):
    return ((x + m - 1) // m) * m


def _kd_kernel(x_ref, w_ref, b_ref, tl_ref, lbl_ref, logits_ref, part_ref, *,
               num_classes, true_batch, block_rows, temperature, t_thresh,
               log_num_classes):
    i = pl.program_id(0)

    # ---- student forward: logits = x @ W + b  (bf16 MXU, f32 accumulate) ----
    x = x_ref[...]                                   # bf16 [TB, H]
    w = w_ref[...]                                   # bf16 [H, C_pad]
    b = b_ref[...]                                   # f32  [1, C_pad]
    s_raw = jnp.dot(x, w, preferred_element_type=jnp.float32) + b   # [TB, C_pad]
    # NOTE: could be emitted as bf16 if downstream accepts; kept f32 here.
    logits_ref[...] = s_raw.astype(logits_ref.dtype)

    tb, c_pad = s_raw.shape
    lane = jax.lax.broadcasted_iota(jnp.int32, (tb, c_pad), 1)
    valid_lane = lane < num_classes
    row = jax.lax.broadcasted_iota(jnp.int32, (tb, 1), 0) + i * block_rows
    valid_row = (row < true_batch).astype(jnp.float32)               # [TB, 1]

    s = jnp.where(valid_lane, s_raw, _NEG)
    tl = jnp.where(valid_lane, tl_ref[...].astype(jnp.float32), _NEG)

    T = temperature

    # ---- student log-softmax (shared max shift for s and s/T) ----
    m = jnp.max(s, axis=-1, keepdims=True)
    zs = s - m
    s_logp = zs - jnp.log(jnp.sum(jnp.exp(zs), axis=-1, keepdims=True))
    s_p = jnp.exp(s_logp)

    zs_t = zs * (1.0 / T)
    s_logp_T = zs_t - jnp.log(jnp.sum(jnp.exp(zs_t), axis=-1, keepdims=True))

    # ---- teacher T-softened softmax ----
    tm = jnp.max(tl, axis=-1, keepdims=True)
    tzs_t = (tl - tm) * (1.0 / T)
    et = jnp.exp(tzs_t)
    t_sum = jnp.sum(et, axis=-1, keepdims=True)
    t_logp_T = tzs_t - jnp.log(t_sum)
    t_p_T = et / t_sum

    # ---- dynamic_kd_loss: instance-entropy-weighted KL divergence ----
    student_entropy = -jnp.sum(s_p * s_logp, axis=-1, keepdims=True)  # [TB,1]
    inst_w = student_entropy * (1.0 / log_num_classes)
    kl = jnp.sum(t_p_T * (t_logp_T - s_logp_T), axis=-1, keepdims=True) * (T * T)
    kd_rows = kl * inst_w * valid_row                                 # [TB,1]

    # ---- entropy_loss: thresholded soft cross-entropy vs sigmoid(teacher) ----
    t_sig = jax.nn.sigmoid(tl)                       # padded lanes -> 0
    conf = jnp.where(jnp.logical_and(t_sig >= t_thresh, valid_lane), t_sig, 0.0)
    ent_rows = -jnp.sum(conf * s_logp, axis=-1, keepdims=True) * valid_row

    # ---- dice_loss (self.loss_func): soft Dice vs one-hot labels ----
    eps = 1e-6
    y = (lane == lbl_ref[...]).astype(jnp.float32)   # labels [TB,1] -> mask
    inter = jnp.sum(s_p * y, axis=-1, keepdims=True)
    denom = jnp.sum(s_p, axis=-1, keepdims=True) + 1.0   # sum(one_hot) == 1
    dice_rows = (1.0 - (2.0 * inter + eps) / (denom + eps)) * valid_row

    # ---- per-tile partial SUMS packed into lanes 0..2 of an (8,128) tile ----
    plane = jax.lax.broadcasted_iota(jnp.int32, (tb, _PART_LANES), 1)
    packed = (jnp.where(plane == 0, kd_rows, 0.0)
              + jnp.where(plane == 1, dice_rows, 0.0)
              + jnp.where(plane == 2, ent_rows, 0.0))
    sums = jnp.sum(packed, axis=0, keepdims=True)                     # [1,128]
    sub = jax.lax.broadcasted_iota(jnp.int32, (8, _PART_LANES), 0)
    part_ref[...] = jnp.where(sub == 0, sums, 0.0)                    # row 0 only


def uncertainty_kd_forward(x, w, b, teacher_logits, labels, *,
                           kd_alpha=0.5, ce_alpha=0.5, en_alpha=0.0,
                           temperature=5.0, t=0.9, training=True,
                           block_rows=512):
    B, H = x.shape
    C = w.shape[1]
    C_pad = _round_up(C, 128)
    block_rows = _round_up(block_rows, 8)
    TB = min(block_rows, _round_up(B, 8))
    B_pad = _round_up(B, TB)
    G = B_pad // TB

    # Wrapper-side layout prep: bf16 MXU inputs, lane-dense class axis,
    # int32 labels (no dense one-hot), batch padded to a multiple of TB.
    x_p = jnp.pad(x.astype(jnp.bfloat16), ((0, B_pad - B), (0, 0)))
    w_p = jnp.pad(w.astype(jnp.bfloat16), ((0, 0), (0, C_pad - C)))
    b_p = jnp.pad(b.astype(jnp.float32).reshape(1, C), ((0, 0), (0, C_pad - C)))
    tl_p = jnp.pad(teacher_logits.astype(jnp.float32),
                   ((0, B_pad - B), (0, C_pad - C)))
    lbl_p = jnp.pad(labels.astype(jnp.int32).reshape(B, 1),
                    ((0, B_pad - B), (0, 0)))

    kernel = functools.partial(
        _kd_kernel,
        num_classes=C, true_batch=B, block_rows=TB,
        temperature=float(temperature), t_thresh=float(t),
        log_num_classes=float(math.log(C)))

    logits_pad, partials = pl.pallas_call(
        kernel,
        out_shape=(jax.ShapeDtypeStruct((B_pad, C_pad), jnp.float32),
                   jax.ShapeDtypeStruct((G * 8, _PART_LANES), jnp.float32)),
        grid=(G,),
        in_specs=[pl.BlockSpec((TB, H), lambda i: (i, 0)),       # x (tiled)
                  pl.BlockSpec((H, C_pad), lambda i: (0, 0)),    # W (resident)
                  pl.BlockSpec((1, C_pad), lambda i: (0, 0)),    # b (resident)
                  pl.BlockSpec((TB, C_pad), lambda i: (i, 0)),   # teacher logits
                  pl.BlockSpec((TB, 1), lambda i: (i, 0))],      # int labels
        out_specs=(pl.BlockSpec((TB, C_pad), lambda i: (i, 0)),  # student logits
                   pl.BlockSpec((8, _PART_LANES), lambda i: (i, 0))),
        compiler_params=pltpu.CompilerParams(
            dimension_semantics=("parallel",),
            vmem_limit_bytes=48 * 1024 * 1024),
    )(x_p, w_p, b_p, tl_p, lbl_p)

    logits = logits_pad[:B, :C]
    if not training:
        return logits  # eval path of the module returns student logits only

    sums = jnp.sum(partials, axis=0)          # [128]; lanes 0..2 carry the sums
    inv_b = 1.0 / float(B)
    kd_loss = sums[0] * inv_b
    dice_loss = sums[1] * inv_b
    entropy_loss = sums[2] * inv_b
    total = ce_alpha * dice_loss + kd_alpha * kd_loss
    if en_alpha != 0.0:
        total = total + en_alpha * entropy_loss
    return (total, kd_loss, dice_loss, entropy_loss), logits


def _reference(x, w, b, teacher_logits, labels, *, kd_alpha, ce_alpha, en_alpha,
               temperature, t):
    """Pure-JAX reference (uses the same bf16 rounding of x/W as the kernel)."""
    C = w.shape[1]
    xb = x.astype(jnp.bfloat16).astype(jnp.float32)
    wb = w.astype(jnp.bfloat16).astype(jnp.float32)
    s = xb @ wb + b
    s_logp = jax.nn.log_softmax(s, axis=-1)
    s_p = jnp.exp(s_logp)
    ent = -jnp.sum(s_p * s_logp, axis=-1)
    inst_w = ent / math.log(C)
    T = temperature
    t_p_T = jax.nn.softmax(teacher_logits / T, axis=-1)
    kl = jnp.sum(t_p_T * (jnp.log(t_p_T) - jax.nn.log_softmax(s / T, axis=-1)),
                 axis=-1) * T * T
    kd = jnp.mean(kl * inst_w)
    t_sig = jax.nn.sigmoid(teacher_logits)
    ent_l = jnp.mean(-jnp.sum((t_sig >= t) * t_sig * s_logp, axis=-1))
    y = jax.nn.one_hot(labels, C)
    inter = jnp.sum(s_p * y, axis=-1)
    denom = jnp.sum(s_p, axis=-1) + 1.0
    dice = jnp.mean(1.0 - (2.0 * inter + 1e-6) / (denom + 1e-6))
    total = ce_alpha * dice + kd_alpha * kd
    if en_alpha != 0.0:
        total = total + en_alpha * ent_l
    return total, kd, dice, ent_l, s


if __name__ == "__main__":
    B, H, C = 8, 32, 8  # batch, hidden (pooled feature dim), num classes

    key = jax.random.PRNGKey(0)
    kx, kw, kb, kt, kl = jax.random.split(key, 5)
    x = jax.random.normal(kx, (B, H), dtype=jnp.float32)
    # deterministic student (linear classifier) parameters
    w = jax.random.normal(kw, (H, C), dtype=jnp.float32) * (1.0 / math.sqrt(H))
    b = jax.random.normal(kb, (C,), dtype=jnp.float32) * 0.02
    teacher_logits = jax.random.normal(kt, (B, C), dtype=jnp.float32) * 2.0
    labels = jax.random.randint(kl, (B,), 0, C)

    hp = dict(kd_alpha=0.5, ce_alpha=0.5, en_alpha=0.0, temperature=5.0, t=0.9)

    (total, kd_l, dice_l, ent_l), logits = uncertainty_kd_forward(
        x, w, b, teacher_logits, labels, training=True, **hp)
    jax.block_until_ready((total, kd_l, dice_l, ent_l, logits))

    # sanity check vs pure-JAX reference
    r_total, r_kd, r_dice, r_ent, r_logits = _reference(
        x, w, b, teacher_logits, labels, **hp)
    assert jnp.allclose(logits, r_logits, rtol=2e-3, atol=2e-3)
    assert jnp.allclose(total, r_total, rtol=2e-3, atol=2e-3)
    assert jnp.allclose(kd_l, r_kd, rtol=2e-3, atol=2e-3)
    assert jnp.allclose(dice_l, r_dice, rtol=2e-3, atol=2e-3)
    assert jnp.allclose(ent_l, r_ent, rtol=2e-3, atol=2e-3)

    # eval-mode path (module returns student logits only)
    eval_logits = uncertainty_kd_forward(
        x, w, b, teacher_logits, labels, training=False, **hp)
    jax.block_until_ready(eval_logits)
    assert jnp.allclose(eval_logits, r_logits, rtol=2e-3, atol=2e-3)

    print("KERNEL_OK")
</pallas_src>

<mosaic_0001>
module attributes {stable_mosaic.version = 11 : i64} {
  func.func @_kd_kernel(%arg0: i32, %arg1: memref<8x32xbf16, #tpu.memory_space<vmem>>, %arg2: memref<32x128xbf16, #tpu.memory_space<vmem>>, %arg3: memref<1x128xf32, #tpu.memory_space<vmem>>, %arg4: memref<8x128xf32, #tpu.memory_space<vmem>>, %arg5: memref<8x1xi32, #tpu.memory_space<vmem>>, %arg6: memref<8x128xf32, #tpu.memory_space<vmem>>, %arg7: memref<8x128xf32, #tpu.memory_space<vmem>>) attributes {dimension_semantics = [#tpu.dimension_semantics<parallel>], iteration_bounds = array<i64: 1>, scalar_prefetch = 0 : i64, scratch_operands = 0 : i64, tpu.core_type = #tpu.core_type<tc>, window_params = [{transform_indices = @transform_0, window_bounds = array<i64: 8, 32>}, {pipeline_mode = #tpu.pipeline_mode<synchronous>, transform_indices = @transform_1, window_bounds = array<i64: 32, 128>}, {pipeline_mode = #tpu.pipeline_mode<synchronous>, transform_indices = @transform_2, window_bounds = array<i64: 1, 128>}, {transform_indices = @transform_3, window_bounds = array<i64: 8, 128>}, {transform_indices = @transform_4, window_bounds = array<i64: 8, 1>}, {transform_indices = @transform_5, window_bounds = array<i64: 8, 128>}, {transform_indices = @transform_6, window_bounds = array<i64: 8, 128>}]} {
    %c0 = arith.constant 0 : index
    %c0_0 = arith.constant 0 : index
    %0 = vector.load %arg1[%c0, %c0_0] : memref<8x32xbf16, #tpu.memory_space<vmem>>, vector<8x32xbf16>
    %c0_1 = arith.constant 0 : index
    %c0_2 = arith.constant 0 : index
    %1 = vector.load %arg2[%c0_1, %c0_2] : memref<32x128xbf16, #tpu.memory_space<vmem>>, vector<32x128xbf16>
    %c0_3 = arith.constant 0 : index
    %c0_4 = arith.constant 0 : index
    %2 = vector.load %arg3[%c0_3, %c0_4] : memref<1x128xf32, #tpu.memory_space<vmem>>, vector<1x128xf32>
    %cst = arith.constant dense<0.000000e+00> : vector<8x128xf32>
    %3 = tpu.matmul %0, %1, %cst {dimension_numbers = #tpu.dot_dimension_numbers<[1], [0], [0], [1], [0, 0, 1, 1], [], []>} : vector<8x32xbf16>, vector<32x128xbf16>, vector<8x128xf32> -> vector<8x128xf32>
    %4 = vector.broadcast %2 : vector<1x128xf32> to vector<8x128xf32>
    %5 = arith.addf %3, %4 : vector<8x128xf32>
    %c0_5 = arith.constant 0 : index
    %c0_6 = arith.constant 0 : index
    %6 = vector.load %arg6[%c0_5, %c0_6] : memref<8x128xf32, #tpu.memory_space<vmem>>, vector<8x128xf32>
    tpu.vector_store %arg6[%c0_5, %c0_6], %5 {strides = array<i32>} : memref<8x128xf32, #tpu.memory_space<vmem>>, vector<8x128xf32>,
    %7 = tpu.iota {dimensions = array<i32: 1>} : vector<8x128xi32>
    %c8_i32 = arith.constant 8 : i32
    %8 = vector.broadcast %c8_i32 : i32 to vector<8x128xi32>
    %9 = arith.cmpi slt, %7, %8 : vector<8x128xi32>
    %10 = tpu.iota {dimensions = array<i32: 0>} : vector<8x1xi32>
    %c8_i32_7 = arith.constant 8 : i32
    %11 = arith.muli %arg0, %c8_i32_7 : i32
    %12 = vector.broadcast %11 : i32 to vector<8x1xi32>
    %13 = arith.addi %10, %12 : vector<8x1xi32>
    %c8_i32_8 = arith.constant 8 : i32
    %14 = vector.broadcast %c8_i32_8 : i32 to vector<8x1xi32>
    %15 = arith.cmpi slt, %13, %14 : vector<8x1xi32>
    %16 = arith.extui %15 : vector<8x1xi1> to vector<8x1xi32>
    %17 = arith.sitofp %16 : vector<8x1xi32> to vector<8x1xf32>
    %cst_9 = arith.constant -1.000000e+30 : f32
    %18 = vector.broadcast %cst_9 : f32 to vector<8x128xf32>
    %19 = arith.select %9, %5, %18 : vector<8x128xi1>, vector<8x128xf32>
    %c0_10 = arith.constant 0 : index
    %c0_11 = arith.constant 0 : index
    %20 = vector.load %arg4[%c0_10, %c0_11] : memref<8x128xf32, #tpu.memory_space<vmem>>, vector<8x128xf32>
    %cst_12 = arith.constant -1.000000e+30 : f32
    %21 = vector.broadcast %cst_12 : f32 to vector<8x128xf32>
    %22 = arith.select %9, %20, %21 : vector<8x128xi1>, vector<8x128xf32>
    %cst_13 = arith.constant dense<0xFF800000> : vector<8xf32>
    %23 = vector.multi_reduction <maximumf>, %19, %cst_13 [1] : vector<8x128xf32> to vector<8xf32>
    %24 = vector.shape_cast %23 : vector<8xf32> to vector<8x1xf32>
    %25 = vector.broadcast %24 : vector<8x1xf32> to vector<8x128xf32>
    %26 = arith.subf %19, %25 : vector<8x128xf32>
    %27 = math.exp %26 : vector<8x128xf32>
    %cst_14 = arith.constant dense<0.000000e+00> : vector<8xf32>
    %28 = vector.multi_reduction <add>, %27, %cst_14 [1] : vector<8x128xf32> to vector<8xf32>
    %29 = vector.shape_cast %28 : vector<8xf32> to vector<8x1xf32>
    %30 = math.log %29 : vector<8x1xf32>
    %31 = vector.broadcast %30 : vector<8x1xf32> to vector<8x128xf32>
    %32 = arith.subf %26, %31 : vector<8x128xf32>
    %33 = math.exp %32 : vector<8x128xf32>
    %cst_15 = arith.constant 2.000000e-01 : f32
    %34 = vector.broadcast %cst_15 : f32 to vector<8x128xf32>
    %35 = arith.mulf %26, %34 : vector<8x128xf32>
    %36 = math.exp %35 : vector<8x128xf32>
    %cst_16 = arith.constant dense<0.000000e+00> : vector<8xf32>
    %37 = vector.multi_reduction <add>, %36, %cst_16 [1] : vector<8x128xf32> to vector<8xf32>
    %38 = vector.shape_cast %37 : vector<8xf32> to vector<8x1xf32>
    %39 = math.log %38 : vector<8x1xf32>
    %40 = vector.broadcast %39 : vector<8x1xf32> to vector<8x128xf32>
    %41 = arith.subf %35, %40 : vector<8x128xf32>
    %cst_17 = arith.constant dense<0xFF800000> : vector<8xf32>
    %42 = vector.multi_reduction <maximumf>, %22, %cst_17 [1] : vector<8x128xf32> to vector<8xf32>
    %43 = vector.shape_cast %42 : vector<8xf32> to vector<8x1xf32>
    %44 = vector.broadcast %43 : vector<8x1xf32> to vector<8x128xf32>
    %45 = arith.subf %22, %44 : vector<8x128xf32>
    %cst_18 = arith.constant 2.000000e-01 : f32
    %46 = vector.broadcast %cst_18 : f32 to vector<8x128xf32>
    %47 = arith.mulf %45, %46 : vector<8x128xf32>
    %48 = math.exp %47 : vector<8x128xf32>
    %cst_19 = arith.constant dense<0.000000e+00> : vector<8xf32>
    %49 = vector.multi_reduction <add>, %48, %cst_19 [1] : vector<8x128xf32> to vector<8xf32>
    %50 = vector.shape_cast %49 : vector<8xf32> to vector<8x1xf32>
    %51 = math.log %50 : vector<8x1xf32>
    %52 = vector.broadcast %51 : vector<8x1xf32> to vector<8x128xf32>
    %53 = arith.subf %47, %52 : vector<8x128xf32>
    %54 = vector.broadcast %50 : vector<8x1xf32> to vector<8x128xf32>
    %55 = arith.divf %48, %54 : vector<8x128xf32>
    %56 = arith.mulf %33, %32 : vector<8x128xf32>
    %cst_20 = arith.constant dense<0.000000e+00> : vector<8xf32>
    %57 = vector.multi_reduction <add>, %56, %cst_20 [1] : vector<8x128xf32> to vector<8xf32>
    %58 = vector.shape_cast %57 : vector<8xf32> to vector<8x1xf32>
    %cst_21 = arith.constant 0.000000e+00 : f32
    %59 = vector.broadcast %cst_21 : f32 to vector<8x1xf32>
    %60 = arith.subf %59, %58 : vector<8x1xf32>
    %cst_22 = arith.constant 0.48089835 : f32
    %61 = vector.broadcast %cst_22 : f32 to vector<8x1xf32>
    %62 = arith.mulf %60, %61 : vector<8x1xf32>
    %63 = arith.subf %53, %41 : vector<8x128xf32>
    %64 = arith.mulf %55, %63 : vector<8x128xf32>
    %cst_23 = arith.constant dense<0.000000e+00> : vector<8xf32>
    %65 = vector.multi_reduction <add>, %64, %cst_23 [1] : vector<8x128xf32> to vector<8xf32>
    %66 = vector.shape_cast %65 : vector<8xf32> to vector<8x1xf32>
    %cst_24 = arith.constant 2.500000e+01 : f32
    %67 = vector.broadcast %cst_24 : f32 to vector<8x1xf32>
    %68 = arith.mulf %66, %67 : vector<8x1xf32>
    %69 = arith.mulf %68, %62 : vector<8x1xf32>
    %70 = arith.mulf %69, %17 : vector<8x1xf32>
    %71 = arith.negf %22 : vector<8x128xf32>
    %72 = math.exp %71 : vector<8x128xf32>
    %cst_25 = arith.constant 1.000000e+00 : f32
    %73 = vector.broadcast %cst_25 : f32 to vector<8x128xf32>
    %74 = arith.addf %73, %72 : vector<8x128xf32>
    %75 = arith.divf %73, %74 : vector<8x128xf32>
    %cst_26 = arith.constant 0.899999976 : f32
    %76 = vector.broadcast %cst_26 : f32 to vector<8x128xf32>
    %77 = arith.cmpf oge, %75, %76 : vector<8x128xf32>
    %78 = arith.andi %77, %9 : vector<8x128xi1>
    %cst_27 = arith.constant 0.000000e+00 : f32
    %79 = vector.broadcast %cst_27 : f32 to vector<8x128xf32>
    %80 = arith.select %78, %75, %79 : vector<8x128xi1>, vector<8x128xf32>
    %81 = arith.mulf %80, %32 : vector<8x128xf32>
    %cst_28 = arith.constant dense<0.000000e+00> : vector<8xf32>
    %82 = vector.multi_reduction <add>, %81, %cst_28 [1] : vector<8x128xf32> to vector<8xf32>
    %83 = vector.shape_cast %82 : vector<8xf32> to vector<8x1xf32>
    %cst_29 = arith.constant 0.000000e+00 : f32
    %84 = vector.broadcast %cst_29 : f32 to vector<8x1xf32>
    %85 = arith.subf %84, %83 : vector<8x1xf32>
    %86 = arith.mulf %85, %17 : vector<8x1xf32>
    %c0_30 = arith.constant 0 : index
    %c0_31 = arith.constant 0 : index
    %87 = vector.load %arg5[%c0_30, %c0_31] : memref<8x1xi32, #tpu.memory_space<vmem>>, vector<8x1xi32>
    %88 = vector.broadcast %87 : vector<8x1xi32> to vector<8x128xi32>
    %89 = arith.cmpi eq, %7, %88 : vector<8x128xi32>
    %90 = arith.extui %89 : vector<8x128xi1> to vector<8x128xi32>
    %91 = arith.sitofp %90 : vector<8x128xi32> to vector<8x128xf32>
    %92 = arith.mulf %33, %91 : vector<8x128xf32>
    %cst_32 = arith.constant dense<0.000000e+00> : vector<8xf32>
    %93 = vector.multi_reduction <add>, %92, %cst_32 [1] : vector<8x128xf32> to vector<8xf32>
    %94 = vector.shape_cast %93 : vector<8xf32> to vector<8x1xf32>
    %cst_33 = arith.constant dense<0.000000e+00> : vector<8xf32>
    %95 = vector.multi_reduction <add>, %33, %cst_33 [1] : vector<8x128xf32> to vector<8xf32>
    %96 = vector.shape_cast %95 : vector<8xf32> to vector<8x1xf32>
    %cst_34 = arith.constant 1.000000e+00 : f32
    %97 = vector.broadcast %cst_34 : f32 to vector<8x1xf32>
    %98 = arith.addf %96, %97 : vector<8x1xf32>
    %cst_35 = arith.constant 2.000000e+00 : f32
    %99 = vector.broadcast %cst_35 : f32 to vector<8x1xf32>
    %100 = arith.mulf %99, %94 : vector<8x1xf32>
    %cst_36 = arith.constant 9.99999997E-7 : f32
    %101 = vector.broadcast %cst_36 : f32 to vector<8x1xf32>
    %102 = arith.addf %100, %101 : vector<8x1xf32>
    %cst_37 = arith.constant 9.99999997E-7 : f32
    %103 = vector.broadcast %cst_37 : f32 to vector<8x1xf32>
    %104 = arith.addf %98, %103 : vector<8x1xf32>
    %105 = arith.divf %102, %104 : vector<8x1xf32>
    %cst_38 = arith.constant 1.000000e+00 : f32
    %106 = vector.broadcast %cst_38 : f32 to vector<8x1xf32>
    %107 = arith.subf %106, %105 : vector<8x1xf32>
    %108 = arith.mulf %107, %17 : vector<8x1xf32>
    %109 = tpu.iota {dimensions = array<i32: 1>} : vector<8x128xi32>
    %c0_i32 = arith.constant 0 : i32
    %110 = vector.broadcast %c0_i32 : i32 to vector<8x128xi32>
    %111 = arith.cmpi eq, %109, %110 : vector<8x128xi32>
    %cst_39 = arith.constant 0.000000e+00 : f32
    %112 = vector.shape_cast %70 : vector<8x1xf32> to vector<8x1xf32>
    %113 = vector.broadcast %112 : vector<8x1xf32> to vector<8x128xf32>
    %114 = vector.broadcast %cst_39 : f32 to vector<8x128xf32>
    %115 = arith.select %111, %113, %114 : vector<8x128xi1>, vector<8x128xf32>
    %c1_i32 = arith.constant 1 : i32
    %116 = vector.broadcast %c1_i32 : i32 to vector<8x128xi32>
    %117 = arith.cmpi eq, %109, %116 : vector<8x128xi32>
    %cst_40 = arith.constant 0.000000e+00 : f32
    %118 = vector.shape_cast %108 : vector<8x1xf32> to vector<8x1xf32>
    %119 = vector.broadcast %118 : vector<8x1xf32> to vector<8x128xf32>
    %120 = vector.broadcast %cst_40 : f32 to vector<8x128xf32>
    %121 = arith.select %117, %119, %120 : vector<8x128xi1>, vector<8x128xf32>
    %122 = arith.addf %115, %121 : vector<8x128xf32>
    %c2_i32 = arith.constant 2 : i32
    %123 = vector.broadcast %c2_i32 : i32 to vector<8x128xi32>
    %124 = arith.cmpi eq, %109, %123 : vector<8x128xi32>
    %cst_41 = arith.constant 0.000000e+00 : f32
    %125 = vector.shape_cast %86 : vector<8x1xf32> to vector<8x1xf32>
    %126 = vector.broadcast %125 : vector<8x1xf32> to vector<8x128xf32>
    %127 = vector.broadcast %cst_41 : f32 to vector<8x128xf32>
    %128 = arith.select %124, %126, %127 : vector<8x128xi1>, vector<8x128xf32>
    %129 = arith.addf %122, %128 : vector<8x128xf32>
    %cst_42 = arith.constant dense<0.000000e+00> : vector<128xf32>
    %130 = vector.multi_reduction <add>, %129, %cst_42 [0] : vector<8x128xf32> to vector<128xf32>
    %131 = vector.shape_cast %130 : vector<128xf32> to vector<1x128xf32>
    %132 = tpu.iota {dimensions = array<i32: 0>} : vector<8x128xi32>
    %c0_i32_43 = arith.constant 0 : i32
    %133 = vector.broadcast %c0_i32_43 : i32 to vector<8x128xi32>
    %134 = arith.cmpi eq, %132, %133 : vector<8x128xi32>
    %cst_44 = arith.constant 0.000000e+00 : f32
    %135 = vector.shape_cast %131 : vector<1x128xf32> to vector<1x128xf32>
    %136 = vector.broadcast %135 : vector<1x128xf32> to vector<8x128xf32>
    %137 = vector.broadcast %cst_44 : f32 to vector<8x128xf32>
    %138 = arith.select %134, %136, %137 : vector<8x128xi1>, vector<8x128xf32>
    %c0_45 = arith.constant 0 : index
    %c0_46 = arith.constant 0 : index
    %139 = vector.load %arg7[%c0_45, %c0_46] : memref<8x128xf32, #tpu.memory_space<vmem>>, vector<8x128xf32>
    tpu.vector_store %arg7[%c0_45, %c0_46], %138 {strides = array<i32>} : memref<8x128xf32, #tpu.memory_space<vmem>>, vector<8x128xf32>,
    return
  }
  func.func @transform_0(%arg0: i32) -> (i32, i32) {
    %c0_i32 = arith.constant 0 : i32
    %c0_i32_0 = arith.constant 0 : i32
    return %arg0, %c0_i32 : i32, i32
  }
  func.func @transform_1(%arg0: i32) -> (i32, i32) {
    %c0_i32 = arith.constant 0 : i32
    %c0_i32_0 = arith.constant 0 : i32
    %c0_i32_1 = arith.constant 0 : i32
    return %c0_i32, %c0_i32_0 : i32, i32
  }
  func.func @transform_2(%arg0: i32) -> (i32, i32) {
    %c0_i32 = arith.constant 0 : i32
    %c0_i32_0 = arith.constant 0 : i32
    %c0_i32_1 = arith.constant 0 : i32
    return %c0_i32, %c0_i32_0 : i32, i32
  }
  func.func @transform_3(%arg0: i32) -> (i32, i32) {
    %c0_i32 = arith.constant 0 : i32
    %c0_i32_0 = arith.constant 0 : i32
    return %arg0, %c0_i32 : i32, i32
  }
  func.func @transform_4(%arg0: i32) -> (i32, i32) {
    %c0_i32 = arith.constant 0 : i32
    %c0_i32_0 = arith.constant 0 : i32
    return %arg0, %c0_i32 : i32, i32
  }
  func.func @transform_5(%arg0: i32) -> (i32, i32) {
    %c0_i32 = arith.constant 0 : i32
    %c0_i32_0 = arith.constant 0 : i32
    return %arg0, %c0_i32 : i32, i32
  }
  func.func @transform_6(%arg0: i32) -> (i32, i32) {
    %c0_i32 = arith.constant 0 : i32
    %c0_i32_0 = arith.constant 0 : i32
    return %arg0, %c0_i32 : i32, i32
  }
}

</mosaic_0001>

<llo_original>
// kernel: tpu_custom_call.1
$region0: #{tpu_custom_call.1}
  #allocation0 [shape = 'u32[]', space=smem, size = 0x4, offset = 0x4, fixed_abs, tag = 'smem constant byte address 0x4 - core index']
  #allocation1 [shape = 'u32[72,128]{1,0:T(1,128)}', space=vmem, size = 0x9000, scoped, tag = 'internal scratch']
  %s0 = inlined_call_operand.hbm [shape: bf16[8,32], index: 0, kind: input, shape index: {}]
  %s1 = inlined_call_operand.hbm [shape: bf16[32,128], index: 1, kind: input, shape index: {}]
  %s2 = inlined_call_operand.vmem [shape: f32[1,128], index: 2, kind: input, shape index: {}]
  %s3 = inlined_call_operand.vmem [shape: f32[8,128], index: 3, kind: input, shape index: {}]
  %s4 = inlined_call_operand.vmem [shape: s32[8,1], index: 4, kind: input, shape index: {}]
  %s5 = inlined_call_operand.hbm [shape: f32[8,128], index: 5, kind: output, shape index: {0}]
  %s6 = inlined_call_operand.hbm [shape: f32[8,128], index: 6, kind: output, shape index: {1}]
  %7 = xla_tuple %s5, %s6
  %s8 = sld [smem:[#allocation0]]
  $region46: #{tpu_custom_call.1} parent=0
    _
  %s10 = ssub.s32 1, %s8
  %s11 = scalar_select 0, %s10, %s8
  $region1: #{tpu_custom_call.1} parent=0
    #allocation2 [shape = 'u8[2048]{0}', space=vmem, size = 0x800, scoped, tag = 'input window, operand 0, single buffered']
    #allocation3 [shape = 's32[1]{0}', space=sflag, size = 0x4, scoped, tag = 'scoped memory for tpu_custom_call.1']
    #allocation4 [shape = 's32[1]{0}', space=sflag, size = 0x4, scoped, tag = 'scoped memory for tpu_custom_call.1']
    #allocation5 [shape = 'u8[8192]{0}', space=vmem, size = 0x2000, scoped, tag = 'input window, operand 1, single buffered']
    #allocation6 [shape = 's32[1]{0}', space=sflag, size = 0x4, scoped, tag = 'scoped memory for tpu_custom_call.1']
    #allocation7 [shape = 'u8[4096]{0}', space=vmem, size = 0x1000, scoped, tag = 'output window, operand 0, single buffered']
    #allocation8 [shape = 'u8[4096]{0}', space=vmem, size = 0x1000, scoped, tag = 'output window, operand 1, single buffered']
    #allocation9 [shape = 's32[1]{0}', space=sflag, size = 0x4, scoped, tag = 'scoped memory for tpu_custom_call.1']
    %12 = vsyncpa [#allocation3], 0
    %13 = vsyncpa [#allocation6], 0
    %14 = vsyncpa [#allocation4], 0
    %15 = vsyncpa [#allocation9], 0
    // Predicated region
    $region2: #{tpu_custom_call.1} parent=1 // pred_check
      _
    $region3: #{tpu_custom_call.1} parent=1 // pred_check_branch
      %17 = sbr.rel (0) target = $region5
    $region4: #{tpu_custom_call.1} parent=1 // pred_region
      %19 = vsyncadd [#allocation3], 0
      %s21 = sshll.u32 %s0, 4
      %s22 = int_to_ptr.hbm [resolvable:$true] %s21
      %s23 = sshll.u32 [#allocation2], 4
      %s24 = int_to_ptr.vmem [resolvable:$true] %s23
      %26 = dma.hbm_to_vmem [thread:$0]  %s22, 64, %s24, [#allocation3]
    $region5: #{tpu_custom_call.1} parent=1 // pred_fallthru
      _
    // Predicated region
    $region6: #{tpu_custom_call.1} parent=1 // pred_check
      _
    $region7: #{tpu_custom_call.1} parent=1 // pred_check_branch
      %28 = sbr.rel (0) target = $region9
    $region8: #{tpu_custom_call.1} parent=1 // pred_region
      %30 = vsyncadd [#allocation6], 0
      %s31 = sshll.u32 %s1, 4
      %s32 = int_to_ptr.hbm [resolvable:$true] %s31
      %s33 = sshll.u32 [#allocation5], 4
      %s34 = int_to_ptr.vmem [resolvable:$true] %s33
      %39 = dma.hbm_to_vmem [thread:$0]  %s32, 256, %s34, [#allocation6], 64, 64, 4
    $region9: #{tpu_custom_call.1} parent=1 // pred_fallthru
      _
    // Predicated region
    $region10: #{tpu_custom_call.1} parent=1 // pred_check
      _
    $region11: #{tpu_custom_call.1} parent=1 // pred_check_branch
      %41 = sbr.rel (0) target = $region13
    $region12: #{tpu_custom_call.1} parent=1 // pred_region
      _
    $region13: #{tpu_custom_call.1} parent=1 // pred_fallthru
      _
    // Predicated region
    $region14: #{tpu_custom_call.1} parent=1 // pred_check
      _
    $region15: #{tpu_custom_call.1} parent=1 // pred_check_branch
      %43 = sbr.rel (0) target = $region17
    $region16: #{tpu_custom_call.1} parent=1 // pred_region
      _
    $region17: #{tpu_custom_call.1} parent=1 // pred_fallthru
      _
    // Predicated region
    $region18: #{tpu_custom_call.1} parent=1 // pred_check
      _
    $region19: #{tpu_custom_call.1} parent=1 // pred_check_branch
      %45 = sbr.rel (0) target = $region21
    $region20: #{tpu_custom_call.1} parent=1 // pred_region
      _
    $region21: #{tpu_custom_call.1} parent=1 // pred_fallthru
      _
    // Predicated region
    $region22: #{tpu_custom_call.1} parent=1 // pred_check
      _
    $region23: #{tpu_custom_call.1} parent=1 // pred_check_branch
      %47 = sbr.rel (0) target = $region25
    $region24: #{tpu_custom_call.1} parent=1 // pred_region
      %49 = dma.done [#allocation3], 64
    $region25: #{tpu_custom_call.1} parent=1 // pred_fallthru
      _
    // Predicated region
    $region26: #{tpu_custom_call.1} parent=1 // pred_check
      _
    $region27: #{tpu_custom_call.1} parent=1 // pred_check_branch
      %51 = sbr.rel (0) target = $region29
    $region28: #{tpu_custom_call.1} parent=1 // pred_region
      %53 = dma.done [#allocation6], 256
    $region29: #{tpu_custom_call.1} parent=1 // pred_fallthru
      _
    %v55 = vld [vmem:[#allocation2] sm:$0xf]
    %v56 = vld [vmem:[#allocation5] sm:$0xf]
    %v57 = vld [vmem:[#allocation5 + $0x4] sm:$0xf]
    %v58 = vld [vmem:[#allocation5 + $0x8] sm:$0xf]
    %v59 = vld [vmem:[#allocation5 + $0xc] sm:$0xf]
    %v60 = vld [vmem:[%s2] sm:$0x1]
    %v62 = vperm.slane %v60, 0
    %v68 = vunpack.c.l.b16 %v56
    %v69 = vunpack.c.l.b16 %v57
    %v70 = vunpack.c.l.b16 %v58
    %v71 = vunpack.c.l.b16 %v59
    %v72 = vpack.c.b16 %v69, %v68
    %v73 = vpack.c.b16 %v71, %v70
    %vm76 = vcmask 261120
    %v78 = vsel %vm76, %v55, 0
    %80 = vmatpush.bf16.msra.mxu0 0
    %81 = vmatpush.bf16.msra.mxu0 0
    %82 = vmatpush.bf16.msra.mxu0 0
    %83 = vmatpush.bf16.msra.mxu0 0
    %84 = vmatpush.bf16.msra.mxu0 0
    %85 = vmatpush.bf16.msra.mxu0 0
    %86 = vmatpush.bf16.msra.mxu0 %v73
    %87 = vmatpush.bf16.msra.mxu0 %v72
    %88 = vmatmul.bf16.gmra.mxu0 %v78
    %v89 = vpop.f32.mrf.mxu0
    %v90 = vadd.f32 %v62, %v89
    %v91 = vpop.f32.mrf.mxu0
    %92 = vdwg.mxu0
    %93 = vst [vmem:[#allocation7] sm:$0xff] %v90
    %v94 = vlaneseq
    %v95 = vand.u32 %v94, 127
    %vm96 = vcmp.lt.s32.totalorder %v95, 8
    %v97 = vlaneseq
    %v98 = vshrl.u32 %v97, 7
    %s99 = smul.u32 0, 8
    %v100 = vstv %s99
    %v101 = vadd.s32 %v98, %v100
    %vm102 = vcmp.lt.s32.totalorder %v101, 8
    %v103 = vsel %vm102, 1, 0
    %v104 = vcvt.s32.f32 %v103
    %v105 = vsel %vm96, %v90, -1e+30
    %v106 = vld [vmem:[%s3] sm:$0xff]
    %v107 = vsel %vm96, %v106, -1e+30
    %108 = vmax.xlane.f32.xlu0 %v105
    %v109 = vpop.xlane.xlu0 %108
    %v110 = vsub.f32 %v105, %v109
    %v111 = vmul.f32 %v110, 1.442695
    %v112 = vpow.pop %v111
    %113 = vadd.xlane.f32.xlu0 %v112
    %v114 = vpop.xlane.xlu0 %113
    %v115 = vlog2.pop %v114
    %v116 = vmul.f32 %v115, 0.6931472
    %v117 = vsub.f32 %v110, %v116
    %v118 = vmul.f32 %v117, 1.442695
    %v119 = vpow.pop %v118
    %v120 = vmul.f32 %v110, 0.2
    %v121 = vmul.f32 %v120, 1.442695
    %v122 = vpow.pop %v121
    %123 = vadd.xlane.f32.xlu0 %v122
    %v124 = vpop.xlane.xlu0 %123
    %v125 = vlog2.pop %v124
    %v126 = vmul.f32 %v125, 0.6931472
    %v127 = vsub.f32 %v120, %v126
    %128 = vmax.xlane.f32.xlu0 %v107
    %v129 = vpop.xlane.xlu0 %128
    %v130 = vsub.f32 %v107, %v129
    %v131 = vmul.f32 %v130, 0.2
    %v132 = vmul.f32 %v131, 1.442695
    %v133 = vpow.pop %v132
    %134 = vadd.xlane.f32.xlu0 %v133
    %v135 = vpop.xlane.xlu0 %134
    %v136 = vlog2.pop %v135
    %v137 = vmul.f32 %v136, 0.6931472
    %v138 = vsub.f32 %v131, %v137
    %v139 = vrcp.pop %v135
    %v140 = vmul.f32 %v135, %v139
    %v141 = vsub.f32 1.0, %v140
    %v142 = vmul.f32 %v139, %v141
    %v143 = vadd.f32 %v139, %v142
    %vm144 = vweird.f32 %v135
    %vm145 = vweird.f32 %v139
    %vm146 = vmor %vm144, %vm145
    %v147 = vsel %vm146, %v139, %v143
    %v148 = vand.u32 2147483647, %v135
    %vm149 = vcmp.eq.f32.partialorder %v148, 8.507059e+37
    %v150 = vand.u32 %v135, 2147483648
    %v151 = vor.u32 1.1754944e-38, %v150
    %v152 = vsel %vm149, %v151, %v147
    %v153 = vmul.f32 %v133, %v152
    %v154 = vmul.f32 %v119, %v117
    %155 = vadd.xlane.f32.xlu0 %v154
    %v156 = vpop.xlane.xlu0 %155
    %v157 = vsub.f32 0.0, %v156
    %v158 = vmul.f32 %v157, 0.48089835
    %v159 = vsub.f32 %v138, %v127
    %v160 = vmul.f32 %v153, %v159
    %161 = vadd.xlane.f32.xlu0 %v160
    %v162 = vpop.xlane.xlu0 %161
    %v163 = vmul.f32 %v162, 25.0
    %v164 = vmul.f32 %v163, %v158
    %v165 = vmul.f32 %v164, %v104
    %v166 = vxor.u32 %v107, 2147483648
    %v167 = vmul.f32 %v166, 1.442695
    %v168 = vpow.pop %v167
    %v169 = vadd.f32 %v168, 1.0
    %v170 = vrcp.pop %v169
    %v171 = vmul.f32 %v169, %v170
    %v172 = vsub.f32 1.0, %v171
    %v173 = vmul.f32 %v170, %v172
    %v174 = vadd.f32 %v170, %v173
    %vm175 = vweird.f32 %v169
    %vm176 = vweird.f32 %v170
    %vm177 = vmor %vm175, %vm176
    %v178 = vsel %vm177, %v170, %v174
    %v179 = vand.u32 2147483647, %v169
    %vm180 = vcmp.eq.f32.partialorder %v179, 8.507059e+37
    %v181 = vand.u32 %v169, 2147483648
    %v182 = vor.u32 1.1754944e-38, %v181
    %v183 = vsel %vm180, %v182, %v178
    %v184 = vmul.f32 1.0, %v183
    %vm185 = vcmp.ge.f32.partialorder %v184, 0.9
    %vm186 = vmand %vm185, %vm96
    %v187 = vsel %vm186, %v184, 0.0
    %v188 = vmul.f32 %v187, %v117
    %189 = vadd.xlane.f32.xlu0 %v188
    %v190 = vpop.xlane.xlu0 %189
    %v191 = vsub.f32 0.0, %v190
    %v192 = vmul.f32 %v191, %v104
    %v193 = vld [vmem:[%s4] sm:$0xff]
    %194 = vset.pattern.permute.xlu0 0
    %195 = vperm.xlu0 %194, %v193
    %v196 = vpop.permute.xlu0 %195
    %vm197 = vcmp.eq.s32.totalorder %v95, %v196
    %v198 = vsel %vm197, 1, 0
    %v199 = vcvt.s32.f32 %v198
    %v200 = vmul.f32 %v119, %v199
    %201 = vadd.xlane.f32.xlu0 %v200
    %v202 = vpop.xlane.xlu0 %201
    %203 = vadd.xlane.f32.xlu0 %v119
    %v204 = vpop.xlane.xlu0 %203
    %v205 = vadd.f32 %v204, 1.0
    %v206 = vmul.f32 %v202, 2.0
    %v207 = vadd.f32 %v206, 1e-06
    %v208 = vadd.f32 %v205, 1e-06
    %v209 = vrcp.pop %v208
    %v210 = vmul.f32 %v208, %v209
    %v211 = vsub.f32 1.0, %v210
    %v212 = vmul.f32 %v209, %v211
    %v213 = vadd.f32 %v209, %v212
    %vm214 = vweird.f32 %v208
    %vm215 = vweird.f32 %v209
    %vm216 = vmor %vm214, %vm215
    %v217 = vsel %vm216, %v209, %v213
    %v218 = vand.u32 2147483647, %v208
    %vm219 = vcmp.eq.f32.partialorder %v218, 8.507059e+37
    %v220 = vand.u32 %v208, 2147483648
    %v221 = vor.u32 1.1754944e-38, %v220
    %v222 = vsel %vm219, %v221, %v217
    %v223 = vmul.f32 %v207, %v222
    %v224 = vsub.f32 1.0, %v223
    %v225 = vmul.f32 %v224, %v104
    %vm226 = vcmp.eq.s32.totalorder %v95, 0
    %v227 = vsel %vm226, %v165, 0.0
    %vm228 = vcmp.eq.s32.totalorder %v95, 1
    %v229 = vsel %vm228, %v225, 0.0
    %v230 = vadd.f32 %v227, %v229
    %vm231 = vcmp.eq.s32.totalorder %v95, 2
    %v232 = vsel %vm231, %v192, 0.0
    %v233 = vadd.f32 %v230, %v232
    %v234 = vrot.slane %v233, 4
    %v235 = vadd.f32 %v233, %v234
    %v236 = vrot.slane %v235, 2
    %v237 = vadd.f32 %v235, %v236
    %v238 = vrot.slane %v237, 1
    %v239 = vadd.f32 %v237, %v238
    %vm240 = vcmp.eq.s32.totalorder %v98, 0
    %v241 = vsel %vm240, %v239, 0.0
    %242 = vst [vmem:[#allocation8] sm:$0xff] %v241
    // Predicated region
    $region30: #{tpu_custom_call.1} parent=1 // pred_check
      _
    $region31: #{tpu_custom_call.1} parent=1 // pred_check_branch
      %244 = sbr.rel (0) target = $region33
    $region32: #{tpu_custom_call.1} parent=1 // pred_region
      %246 = vsyncadd [#allocation4], 0
      %s248 = sshll.u32 [#allocation7], 4
      %s249 = int_to_ptr.vmem [resolvable:$true] %s248
      %s250 = sshll.u32 %s5, 4
      %s251 = int_to_ptr.hbm [resolvable:$true] %s250
      %253 = dma.vmem_to_hbm [thread:$0]  %s249, 128, %s251, [#allocation4]
    $region33: #{tpu_custom_call.1} parent=1 // pred_fallthru
      _
    // Predicated region
    $region34: #{tpu_custom_call.1} parent=1 // pred_check
      _
    $region35: #{tpu_custom_call.1} parent=1 // pred_check_branch
      %255 = sbr.rel (0) target = $region37
    $region36: #{tpu_custom_call.1} parent=1 // pred_region
      %257 = vsyncadd [#allocation9], 0
      %s259 = sshll.u32 [#allocation8], 4
      %s260 = int_to_ptr.vmem [resolvable:$true] %s259
      %s261 = sshll.u32 %s6, 4
      %s262 = int_to_ptr.hbm [resolvable:$true] %s261
      %264 = dma.vmem_to_hbm [thread:$0]  %s260, 128, %s262, [#allocation9]
    $region37: #{tpu_custom_call.1} parent=1 // pred_fallthru
      _
    // Predicated region
    $region38: #{tpu_custom_call.1} parent=1 // pred_check
      _
    $region39: #{tpu_custom_call.1} parent=1 // pred_check_branch
      %266 = sbr.rel (0) target = $region41
    $region40: #{tpu_custom_call.1} parent=1 // pred_region
      %268 = dma.done [#allocation4], 128
    $region41: #{tpu_custom_call.1} parent=1 // pred_fallthru
      _
    // Predicated region
    $region42: #{tpu_custom_call.1} parent=1 // pred_check
      _
    $region43: #{tpu_custom_call.1} parent=1 // pred_check_branch
      %270 = sbr.rel (0) target = $region45
    $region44: #{tpu_custom_call.1} parent=1 // pred_region
      %272 = dma.done [#allocation9], 128
    $region45: #{tpu_custom_call.1} parent=1 // pred_fallthru
      _
    %273 = vsyncpa [#allocation3], 1
    %274 = vsyncpa [#allocation6], 1
    %275 = vsyncpa [#allocation4], 1
    %276 = vsyncpa [#allocation9], 1

</llo_original>
